<compile_context>
chip_gen: v6e
topology: v6e:2x2x1
jax: 0.10.0
libtpu: 0.0.40
codegen_flags: <defaults>
</compile_context>

<pallas_src>
import functools

import jax
import jax.numpy as jnp
from jax.experimental import pallas as pl
from jax.experimental.pallas import tpu as pltpu

N_EMBD = 64
HIDDEN = 4 * N_EMBD  # 256


def _ffn_kernel(x_ref, w1_ref, b1_ref, w2_ref, b2_ref, o_ref, *, n_in):
    # x_ref : (tm_p, pack*C) compute dtype   (pack*C == 128 when C == 64)
    # w1_ref: (C, H), w2_ref: (H, C)         compute dtype (bf16 by default)
    # b1_ref: (1, H),  b2_ref: (1, C)        float32
    # o_ref : (tm_p, pack*C)                 float32 (lane-dense store)
    xw = x_ref[...]
    w1 = w1_ref[...]
    w2 = w2_ref[...]
    b1 = b1_ref[...]
    b2 = b2_ref[...]

    halves = xw.shape[-1] // n_in  # static pack factor (1 or 2)

    def ff(xb):
        h = jnp.dot(xb, w1, preferred_element_type=jnp.float32) + b1
        h = jnp.maximum(h, 0.0)  # ReLU
        return jnp.dot(h.astype(w2.dtype), w2,
                       preferred_element_type=jnp.float32) + b2

    ys = [ff(xw[:, i * n_in:(i + 1) * n_in]) for i in range(halves)]
    y = ys[0] if halves == 1 else jnp.concatenate(ys, axis=-1)
    # Dropout(p=0.2) in eval/inference mode is identity.
    o_ref[...] = y.astype(o_ref.dtype)


@functools.partial(jax.jit, static_argnames=("tm", "compute_dtype"))
def feed_forward(x, w1, b1, w2, b2, *, tm=1024, compute_dtype=jnp.bfloat16):
    """x: (..., C) float -> (..., C); HeartGPT FeedForward forward pass (eval mode)."""
    orig_shape = x.shape
    C = orig_shape[-1]
    H = w1.shape[1]
    x2d = x.reshape(-1, C)
    M = x2d.shape[0]

    # Fold `pack` consecutive rows into one lane-dense row of width pack*C (=128).
    pack = 2 if (C < 128 and (2 * C) % 128 == 0) else 1
    row_align = 8 * pack  # packed tile needs >= 8 sublanes

    # Row tile: aligned to row_align, at least one (8,128) tile, no larger than needed.
    tm = max(row_align, (min(tm, max(M, row_align)) // row_align) * row_align)

    # Pad rows so the grid covers M exactly (handles arbitrary / odd B*T).
    M_pad = pl.cdiv(M, tm) * tm
    if M_pad != M:
        x2d = jnp.pad(x2d, ((0, M_pad - M), (0, 0)))

    xc = x2d.astype(compute_dtype).reshape(M_pad // pack, pack * C)
    w1c = w1.astype(compute_dtype)
    w2c = w2.astype(compute_dtype)
    b1f = b1.reshape(1, H).astype(jnp.float32)
    b2f = b2.reshape(1, C).astype(jnp.float32)

    tm_p = tm // pack
    cp = pack * C
    grid = (M_pad // tm,)

    out_packed = pl.pallas_call(
        functools.partial(_ffn_kernel, n_in=C),
        out_shape=jax.ShapeDtypeStruct((M_pad // pack, cp), jnp.float32),
        grid_spec=pltpu.PrefetchScalarGridSpec(
            num_scalar_prefetch=0,
            grid=grid,
            in_specs=[
                pl.BlockSpec((tm_p, cp), lambda i: (i, 0)),  # x rows, lane-dense
                pl.BlockSpec((C, H), lambda i: (0, 0)),      # W1 (VMEM-resident)
                pl.BlockSpec((1, H), lambda i: (0, 0)),      # b1
                pl.BlockSpec((H, C), lambda i: (0, 0)),      # W2 (VMEM-resident)
                pl.BlockSpec((1, C), lambda i: (0, 0)),      # b2
            ],
            out_specs=pl.BlockSpec((tm_p, cp), lambda i: (i, 0)),
        ),
        compiler_params=pltpu.CompilerParams(
            dimension_semantics=("parallel",),  # megacore / v7x dual-TC sharding
        ),
    )(xc, w1c, b1f, w2c, b2f)

    out2d = out_packed.reshape(M_pad, C)[:M]
    return out2d.reshape(orig_shape).astype(x.dtype)


def _reference(x, w1, b1, w2, b2):
    h = jnp.maximum(x @ w1 + b1, 0.0)
    return h @ w2 + b2


if __name__ == "__main__":
    key = jax.random.PRNGKey(0)
    k_x, k_w1, k_b1, k_w2, k_b2 = jax.random.split(key, 5)

    B, T, C = 2, 8, N_EMBD
    x = jax.random.normal(k_x, (B, T, C), dtype=jnp.float32)

    # PyTorch Linear stores (out, in); we store (in, out) so the hot path is x @ W + b.
    scale1 = 1.0 / jnp.sqrt(jnp.float32(C))
    scale2 = 1.0 / jnp.sqrt(jnp.float32(HIDDEN))
    w1 = jax.random.uniform(k_w1, (C, HIDDEN), jnp.float32, -scale1, scale1)
    b1 = jax.random.uniform(k_b1, (HIDDEN,), jnp.float32, -scale1, scale1)
    w2 = jax.random.uniform(k_w2, (HIDDEN, C), jnp.float32, -scale2, scale2)
    b2 = jax.random.uniform(k_b2, (C,), jnp.float32, -scale2, scale2)

    ref = _reference(x, w1, b1, w2, b2)

    # f32 compute path: should match the reference tightly.
    out_f32 = jax.block_until_ready(
        feed_forward(x, w1, b1, w2, b2, compute_dtype=jnp.float32))
    assert out_f32.shape == (B, T, C)
    assert jnp.allclose(out_f32, ref, atol=1e-4, rtol=1e-4), "f32 mismatch vs reference"

    # Default bf16 (MXU-native) path: looser tolerance vs the f32 reference.
    out_bf16 = jax.block_until_ready(feed_forward(x, w1, b1, w2, b2))
    assert out_bf16.shape == (B, T, C)
    assert jnp.allclose(out_bf16, ref, atol=5e-2, rtol=5e-2), "bf16 mismatch vs reference"

    # Ragged row count (B*T odd, not a multiple of the tile) exercises padding path.
    x_odd = jax.random.normal(k_x, (3, 7, C), dtype=jnp.float32)
    out_odd = jax.block_until_ready(feed_forward(x_odd, w1, b1, w2, b2))
    ref_odd = _reference(x_odd, w1, b1, w2, b2)
    assert out_odd.shape == (3, 7, C)
    assert jnp.allclose(out_odd, ref_odd, atol=5e-2, rtol=5e-2), "ragged-M mismatch"

    print("KERNEL_OK")
</pallas_src>

<mosaic_0001>
module attributes {stable_mosaic.version = 11 : i64} {
  func.func @_ffn_kernel(%arg0: i32, %arg1: memref<8x128xf32, #tpu.memory_space<vmem>>, %arg2: memref<64x256xf32, #tpu.memory_space<vmem>>, %arg3: memref<1x256xf32, #tpu.memory_space<vmem>>, %arg4: memref<256x64xf32, #tpu.memory_space<vmem>>, %arg5: memref<1x64xf32, #tpu.memory_space<vmem>>, %arg6: memref<8x128xf32, #tpu.memory_space<vmem>>) attributes {dimension_semantics = [#tpu.dimension_semantics<parallel>], iteration_bounds = array<i64: 1>, scalar_prefetch = 0 : i64, scratch_operands = 0 : i64, tpu.core_type = #tpu.core_type<tc>, window_params = [{transform_indices = @transform_0, window_bounds = array<i64: 8, 128>}, {pipeline_mode = #tpu.pipeline_mode<synchronous>, transform_indices = @transform_1, window_bounds = array<i64: 64, 256>}, {pipeline_mode = #tpu.pipeline_mode<synchronous>, transform_indices = @transform_2, window_bounds = array<i64: 1, 256>}, {pipeline_mode = #tpu.pipeline_mode<synchronous>, transform_indices = @transform_3, window_bounds = array<i64: 256, 64>}, {pipeline_mode = #tpu.pipeline_mode<synchronous>, transform_indices = @transform_4, window_bounds = array<i64: 1, 64>}, {transform_indices = @transform_5, window_bounds = array<i64: 8, 128>}]} {
    %c0 = arith.constant 0 : index
    %c0_0 = arith.constant 0 : index
    %0 = vector.load %arg1[%c0, %c0_0] : memref<8x128xf32, #tpu.memory_space<vmem>>, vector<8x128xf32>
    %c0_1 = arith.constant 0 : index
    %c0_2 = arith.constant 0 : index
    %1 = vector.load %arg2[%c0_1, %c0_2] : memref<64x256xf32, #tpu.memory_space<vmem>>, vector<64x256xf32>
    %c0_3 = arith.constant 0 : index
    %c0_4 = arith.constant 0 : index
    %2 = vector.load %arg4[%c0_3, %c0_4] : memref<256x64xf32, #tpu.memory_space<vmem>>, vector<256x64xf32>
    %c0_5 = arith.constant 0 : index
    %c0_6 = arith.constant 0 : index
    %3 = vector.load %arg3[%c0_5, %c0_6] : memref<1x256xf32, #tpu.memory_space<vmem>>, vector<1x256xf32>
    %c0_7 = arith.constant 0 : index
    %c0_8 = arith.constant 0 : index
    %4 = vector.load %arg5[%c0_7, %c0_8] : memref<1x64xf32, #tpu.memory_space<vmem>>, vector<1x64xf32>
    %5 = vector.extract_strided_slice %0 {offsets = [0, 0], sizes = [8, 64], strides = [1, 1]} : vector<8x128xf32> to vector<8x64xf32>
    %cst = arith.constant dense<0.000000e+00> : vector<8x256xf32>
    %6 = tpu.matmul %5, %1, %cst {dimension_numbers = #tpu.dot_dimension_numbers<[1], [0], [0], [1], [0, 0, 1, 1], [], []>} : vector<8x64xf32>, vector<64x256xf32>, vector<8x256xf32> -> vector<8x256xf32>
    %7 = vector.broadcast %3 : vector<1x256xf32> to vector<8x256xf32>
    %8 = arith.addf %6, %7 : vector<8x256xf32>
    %cst_9 = arith.constant 0.000000e+00 : f32
    %9 = vector.broadcast %cst_9 : f32 to vector<8x256xf32>
    %10 = arith.maximumf %8, %9 : vector<8x256xf32>
    %cst_10 = arith.constant dense<0.000000e+00> : vector<8x64xf32>
    %11 = tpu.matmul %10, %2, %cst_10 {dimension_numbers = #tpu.dot_dimension_numbers<[1], [0], [0], [1], [0, 0, 1, 1], [], []>} : vector<8x256xf32>, vector<256x64xf32>, vector<8x64xf32> -> vector<8x64xf32>
    %12 = vector.broadcast %4 : vector<1x64xf32> to vector<8x64xf32>
    %13 = arith.addf %11, %12 : vector<8x64xf32>
    %14 = vector.extract_strided_slice %0 {offsets = [0, 64], sizes = [8, 64], strides = [1, 1]} : vector<8x128xf32> to vector<8x64xf32>
    %cst_11 = arith.constant dense<0.000000e+00> : vector<8x256xf32>
    %15 = tpu.matmul %14, %1, %cst_11 {dimension_numbers = #tpu.dot_dimension_numbers<[1], [0], [0], [1], [0, 0, 1, 1], [], []>} : vector<8x64xf32>, vector<64x256xf32>, vector<8x256xf32> -> vector<8x256xf32>
    %16 = vector.broadcast %3 : vector<1x256xf32> to vector<8x256xf32>
    %17 = arith.addf %15, %16 : vector<8x256xf32>
    %cst_12 = arith.constant 0.000000e+00 : f32
    %18 = vector.broadcast %cst_12 : f32 to vector<8x256xf32>
    %19 = arith.maximumf %17, %18 : vector<8x256xf32>
    %cst_13 = arith.constant dense<0.000000e+00> : vector<8x64xf32>
    %20 = tpu.matmul %19, %2, %cst_13 {dimension_numbers = #tpu.dot_dimension_numbers<[1], [0], [0], [1], [0, 0, 1, 1], [], []>} : vector<8x256xf32>, vector<256x64xf32>, vector<8x64xf32> -> vector<8x64xf32>
    %21 = vector.broadcast %4 : vector<1x64xf32> to vector<8x64xf32>
    %22 = arith.addf %20, %21 : vector<8x64xf32>
    %23 = tpu.concatenate %13, %22 in 1 : vector<8x64xf32>, vector<8x64xf32> -> vector<8x128xf32>
    %c0_14 = arith.constant 0 : index
    %c0_15 = arith.constant 0 : index
    %24 = vector.load %arg6[%c0_14, %c0_15] : memref<8x128xf32, #tpu.memory_space<vmem>>, vector<8x128xf32>
    tpu.vector_store %arg6[%c0_14, %c0_15], %23 {strides = array<i32>} : memref<8x128xf32, #tpu.memory_space<vmem>>, vector<8x128xf32>,
    return
  }
  func.func @transform_0(%arg0: i32) -> (i32, i32) {
    %c0_i32 = arith.constant 0 : i32
    %c0_i32_0 = arith.constant 0 : i32
    return %arg0, %c0_i32 : i32, i32
  }
  func.func @transform_1(%arg0: i32) -> (i32, i32) {
    %c0_i32 = arith.constant 0 : i32
    %c0_i32_0 = arith.constant 0 : i32
    %c0_i32_1 = arith.constant 0 : i32
    return %c0_i32, %c0_i32_0 : i32, i32
  }
  func.func @transform_2(%arg0: i32) -> (i32, i32) {
    %c0_i32 = arith.constant 0 : i32
    %c0_i32_0 = arith.constant 0 : i32
    %c0_i32_1 = arith.constant 0 : i32
    return %c0_i32, %c0_i32_0 : i32, i32
  }
  func.func @transform_3(%arg0: i32) -> (i32, i32) {
    %c0_i32 = arith.constant 0 : i32
    %c0_i32_0 = arith.constant 0 : i32
    %c0_i32_1 = arith.constant 0 : i32
    return %c0_i32, %c0_i32_0 : i32, i32
  }
  func.func @transform_4(%arg0: i32) -> (i32, i32) {
    %c0_i32 = arith.constant 0 : i32
    %c0_i32_0 = arith.constant 0 : i32
    %c0_i32_1 = arith.constant 0 : i32
    return %c0_i32, %c0_i32_0 : i32, i32
  }
  func.func @transform_5(%arg0: i32) -> (i32, i32) {
    %c0_i32 = arith.constant 0 : i32
    %c0_i32_0 = arith.constant 0 : i32
    return %arg0, %c0_i32 : i32, i32
  }
}

</mosaic_0001>

<llo_original>
// kernel: feed_forward.1
$region0: #{feed_forward.1}
  #allocation0 [shape = 'u32[]', space=smem, size = 0x4, offset = 0x4, fixed_abs, tag = 'smem constant byte address 0x4 - core index']
  #allocation1 [shape = 'u32[144,128]{1,0:T(1,128)}', space=vmem, size = 0x12000, scoped, tag = 'internal scratch']
  %s0 = inlined_call_operand.vmem [shape: f32[8,128], index: 0, kind: input, shape index: {}]
  %s1 = inlined_call_operand.vmem [shape: f32[64,256], index: 1, kind: input, shape index: {}]
  %s2 = inlined_call_operand.vmem [shape: f32[1,256], index: 2, kind: input, shape index: {}]
  %s3 = inlined_call_operand.vmem [shape: f32[256,64], index: 3, kind: input, shape index: {}]
  %s4 = inlined_call_operand.vmem [shape: f32[1,64], index: 4, kind: input, shape index: {}]
  %s5 = inlined_call_operand.vmem [shape: f32[8,128], index: 5, kind: output, shape index: {}]
  %s6 = sld [smem:[#allocation0]]
  $region30: #{feed_forward.1} parent=0
    _
  %s8 = ssub.s32 1, %s6
  %s9 = scalar_select 0, %s8, %s6
  // Predicated region
  $region2: #{feed_forward.1} parent=0 // pred_check
    _
  $region3: #{feed_forward.1} parent=0 // pred_check_branch
    %11 = sbr.rel (0) target = $region5
  $region4: #{feed_forward.1} parent=0 // pred_region
    _
  $region5: #{feed_forward.1} parent=0 // pred_fallthru
    _
  // Predicated region
  $region6: #{feed_forward.1} parent=0 // pred_check
    _
  $region7: #{feed_forward.1} parent=0 // pred_check_branch
    %13 = sbr.rel (0) target = $region9
  $region8: #{feed_forward.1} parent=0 // pred_region
    _
  $region9: #{feed_forward.1} parent=0 // pred_fallthru
    _
  // Predicated region
  $region10: #{feed_forward.1} parent=0 // pred_check
    _
  $region11: #{feed_forward.1} parent=0 // pred_check_branch
    %15 = sbr.rel (0) target = $region13
  $region12: #{feed_forward.1} parent=0 // pred_region
    _
  $region13: #{feed_forward.1} parent=0 // pred_fallthru
    _
  // Predicated region
  $region14: #{feed_forward.1} parent=0 // pred_check
    _
  $region15: #{feed_forward.1} parent=0 // pred_check_branch
    %17 = sbr.rel (0) target = $region17
  $region16: #{feed_forward.1} parent=0 // pred_region
    _
  $region17: #{feed_forward.1} parent=0 // pred_fallthru
    _
  // Predicated region
  $region18: #{feed_forward.1} parent=0 // pred_check
    _
  $region19: #{feed_forward.1} parent=0 // pred_check_branch
    %19 = sbr.rel (0) target = $region21
  $region20: #{feed_forward.1} parent=0 // pred_region
    _
  $region21: #{feed_forward.1} parent=0 // pred_fallthru
    _
  %v20 = vld [vmem:[%s0] sm:$0xff]
  %v21 = vld [vmem:[%s1] sm:$0xff]
  %v22 = vld [vmem:[%s1 + $0x8] sm:$0xff]
  %v23 = vld [vmem:[%s1 + $0x10] sm:$0xff]
  %v24 = vld [vmem:[%s1 + $0x18] sm:$0xff]
  %v25 = vld [vmem:[%s1 + $0x20] sm:$0xff]
  %v26 = vld [vmem:[%s1 + $0x28] sm:$0xff]
  %v27 = vld [vmem:[%s1 + $0x30] sm:$0xff]
  %v28 = vld [vmem:[%s1 + $0x38] sm:$0xff]
  %v29 = vld [vmem:[%s1 + $0x40] sm:$0xff]
  %v30 = vld [vmem:[%s1 + $0x48] sm:$0xff]
  %v31 = vld [vmem:[%s1 + $0x50] sm:$0xff]
  %v32 = vld [vmem:[%s1 + $0x58] sm:$0xff]
  %v33 = vld [vmem:[%s1 + $0x60] sm:$0xff]
  %v34 = vld [vmem:[%s1 + $0x68] sm:$0xff]
  %v35 = vld [vmem:[%s1 + $0x70] sm:$0xff]
  %v36 = vld [vmem:[%s1 + $0x78] sm:$0xff]
  %v37 = vld [vmem:[%s3] sm:$0xff]
  %v38 = vld [vmem:[%s3 + $0x8] sm:$0xff]
  %v39 = vld [vmem:[%s3 + $0x10] sm:$0xff]
  %v40 = vld [vmem:[%s3 + $0x18] sm:$0xff]
  %v41 = vld [vmem:[%s3 + $0x20] sm:$0xff]
  %v42 = vld [vmem:[%s3 + $0x28] sm:$0xff]
  %v43 = vld [vmem:[%s3 + $0x30] sm:$0xff]
  %v44 = vld [vmem:[%s3 + $0x38] sm:$0xff]
  %v45 = vld [vmem:[%s3 + $0x40] sm:$0xff]
  %v46 = vld [vmem:[%s3 + $0x48] sm:$0xff]
  %v47 = vld [vmem:[%s3 + $0x50] sm:$0xff]
  %v48 = vld [vmem:[%s3 + $0x58] sm:$0xff]
  %v49 = vld [vmem:[%s3 + $0x60] sm:$0xff]
  %v50 = vld [vmem:[%s3 + $0x68] sm:$0xff]
  %v51 = vld [vmem:[%s3 + $0x70] sm:$0xff]
  %v52 = vld [vmem:[%s3 + $0x78] sm:$0xff]
  %v53 = vld [vmem:[%s3 + $0x80] sm:$0xff]
  %v54 = vld [vmem:[%s3 + $0x88] sm:$0xff]
  %v55 = vld [vmem:[%s3 + $0x90] sm:$0xff]
  %v56 = vld [vmem:[%s3 + $0x98] sm:$0xff]
  %v57 = vld [vmem:[%s3 + $0xa0] sm:$0xff]
  %v58 = vld [vmem:[%s3 + $0xa8] sm:$0xff]
  %v59 = vld [vmem:[%s3 + $0xb0] sm:$0xff]
  %v60 = vld [vmem:[%s3 + $0xb8] sm:$0xff]
  %v61 = vld [vmem:[%s3 + $0xc0] sm:$0xff]
  %v62 = vld [vmem:[%s3 + $0xc8] sm:$0xff]
  %v63 = vld [vmem:[%s3 + $0xd0] sm:$0xff]
  %v64 = vld [vmem:[%s3 + $0xd8] sm:$0xff]
  %v65 = vld [vmem:[%s3 + $0xe0] sm:$0xff]
  %v66 = vld [vmem:[%s3 + $0xe8] sm:$0xff]
  %v67 = vld [vmem:[%s3 + $0xf0] sm:$0xff]
  %v68 = vld [vmem:[%s3 + $0xf8] sm:$0xff]
  %v69 = vld [vmem:[%s2] sm:$0x3]
  %v70 = vld [vmem:[%s4] sm:$0x1]
  %v72 = vlaneseq
  %v73 = vshrl.u32 %v72, 7
  %v74 = vsub.s32 0, %v73
  %v75 = vrot.slane %v69, %v74
  %v76 = vlaneseq
  %v77 = vshrl.u32 %v76, 7
  %v78 = vsub.s32 1, %v77
  %v79 = vrot.slane %v69, %v78
  %vm82 = vcmask 523264
  %v84 = vsel %vm82, %v20, 0
  %86 = vmatprep.subr.mxu0 0.0
  %87 = vmatpush1.msra.mxu0 0.0
  %88 = vmatprep.subr.mxu0 0.0
  %89 = vmatpush1.msra.mxu0 0.0
  %90 = vmatprep.subr.mxu0 0.0
  %91 = vmatpush1.msra.mxu0 0.0
  %92 = vmatprep.subr.mxu0 0.0
  %93 = vmatpush1.msra.mxu0 0.0
  %94 = vmatprep.subr.mxu0 0.0
  %95 = vmatpush1.msra.mxu0 0.0
  %96 = vmatprep.subr.mxu0 0.0
  %97 = vmatpush1.msra.mxu0 0.0
  %98 = vmatprep.subr.mxu0 0.0
  %99 = vmatpush1.msra.mxu0 0.0
  %100 = vmatprep.subr.mxu0 0.0
  %101 = vmatpush1.msra.mxu0 0.0
  %102 = vmatprep.subr.mxu0 %v36
  %103 = vmatpush1.msra.mxu0 %v35
  %104 = vmatprep.subr.mxu0 %v34
  %105 = vmatpush1.msra.mxu0 %v33
  %106 = vmatprep.subr.mxu0 %v32
  %107 = vmatpush1.msra.mxu0 %v31
  %108 = vmatprep.subr.mxu0 %v30
  %109 = vmatpush1.msra.mxu0 %v29
  %110 = vmatprep.subr.mxu0 %v28
  %111 = vmatpush1.msra.mxu0 %v27
  %112 = vmatprep.subr.mxu0 %v26
  %113 = vmatpush1.msra.mxu0 %v25
  %114 = vmatprep.subr.mxu0 %v24
  %115 = vmatpush1.msra.mxu0 %v23
  %116 = vmatprep.subr.mxu0 %v22
  %117 = vmatpush1.msra.mxu0 %v21
  %118 = vmatprep.subr.mxu0 0.0
  %119 = vmatpush2.msra.mxu0 0.0
  %120 = vmatprep.subr.mxu0 0.0
  %121 = vmatpush2.msra.mxu0 0.0
  %122 = vmatprep.subr.mxu0 0.0
  %123 = vmatpush2.msra.mxu0 0.0
  %124 = vmatprep.subr.mxu0 0.0
  %125 = vmatpush2.msra.mxu0 0.0
  %126 = vmatprep.subr.mxu0 0.0
  %127 = vmatpush2.msra.mxu0 0.0
  %128 = vmatprep.subr.mxu0 0.0
  %129 = vmatpush2.msra.mxu0 0.0
  %130 = vmatprep.subr.mxu0 0.0
  %131 = vmatpush2.msra.mxu0 0.0
  %132 = vmatprep.subr.mxu0 0.0
  %133 = vmatpush2.msra.mxu0 0.0
  %134 = vmatprep.subr.mxu0 0.0
  %135 = vmatpush2.msra.mxu0 0.0
  %136 = vmatprep.subr.mxu0 0.0
  %137 = vmatpush2.msra.mxu0 0.0
  %138 = vmatprep.subr.mxu0 0.0
  %139 = vmatpush2.msra.mxu0 0.0
  %140 = vmatprep.subr.mxu0 0.0
  %141 = vmatpush2.msra.mxu0 0.0
  %142 = vmatprep.subr.mxu0 0.0
  %143 = vmatpush2.msra.mxu0 0.0
  %144 = vmatprep.subr.mxu0 0.0
  %145 = vmatpush2.msra.mxu0 0.0
  %146 = vmatprep.subr.mxu0 0.0
  %147 = vmatpush2.msra.mxu0 0.0
  %148 = vmatprep.subr.mxu0 0.0
  %149 = vmatpush2.msra.mxu0 0.0
  %150 = vmatprep.mubr.f32.mxu0 0.0
  %151 = vmatmul.mubr.f32.gmra.mxu0 %v84
  %v152 = vpop.f32.mrf.mxu0
  %v153 = vadd.f32 %v75, %v152
  %v154 = vpop.f32.mrf.mxu0
  %v155 = vadd.f32 %v79, %v154
  %156 = vdwg.mxu0
  %v157 = vmax.f32 %v153, 0.0
  %v158 = vmax.f32 %v155, 0.0
  %v160 = vlaneseq
  %v161 = vshrl.u32 %v160, 7
  %v162 = vsub.s32 0, %v161
  %v163 = vrot.slane %v70, %v162
  %165 = vmatprep.subr.mxu0 0.0
  %166 = vmatpush1.msra.mxu0 %v52
  %167 = vmatprep.subr.mxu0 0.0
  %168 = vmatpush1.msra.mxu0 %v51
  %169 = vmatprep.subr.mxu0 0.0
  %170 = vmatpush1.msra.mxu0 %v50
  %171 = vmatprep.subr.mxu0 0.0
  %172 = vmatpush1.msra.mxu0 %v49
  %173 = vmatprep.subr.mxu0 0.0
  %174 = vmatpush1.msra.mxu0 %v48
  %175 = vmatprep.subr.mxu0 0.0
  %176 = vmatpush1.msra.mxu0 %v47
  %177 = vmatprep.subr.mxu0 0.0
  %178 = vmatpush1.msra.mxu0 %v46
  %179 = vmatprep.subr.mxu0 0.0
  %180 = vmatpush1.msra.mxu0 %v45
  %181 = vmatprep.subr.mxu0 0.0
  %182 = vmatpush1.msra.mxu0 %v44
  %183 = vmatprep.subr.mxu0 0.0
  %184 = vmatpush1.msra.mxu0 %v43
  %185 = vmatprep.subr.mxu0 0.0
  %186 = vmatpush1.msra.mxu0 %v42
  %187 = vmatprep.subr.mxu0 0.0
  %188 = vmatpush1.msra.mxu0 %v41
  %189 = vmatprep.subr.mxu0 0.0
  %190 = vmatpush1.msra.mxu0 %v40
  %191 = vmatprep.subr.mxu0 0.0
  %192 = vmatpush1.msra.mxu0 %v39
  %193 = vmatprep.subr.mxu0 0.0
  %194 = vmatpush1.msra.mxu0 %v38
  %195 = vmatprep.subr.mxu0 0.0
  %196 = vmatpush1.msra.mxu0 %v37
  %197 = vmatprep.subr.mxu0 0.0
  %198 = vmatpush2.msra.mxu0 %v68
  %199 = vmatprep.subr.mxu0 0.0
  %200 = vmatpush2.msra.mxu0 %v67
  %201 = vmatprep.subr.mxu0 0.0
  %202 = vmatpush2.msra.mxu0 %v66
  %203 = vmatprep.subr.mxu0 0.0
  %204 = vmatpush2.msra.mxu0 %v65
  %205 = vmatprep.subr.mxu0 0.0
  %206 = vmatpush2.msra.mxu0 %v64
  %207 = vmatprep.subr.mxu0 0.0
  %208 = vmatpush2.msra.mxu0 %v63
  %209 = vmatprep.subr.mxu0 0.0
  %210 = vmatpush2.msra.mxu0 %v62
  %211 = vmatprep.subr.mxu0 0.0
  %212 = vmatpush2.msra.mxu0 %v61
  %213 = vmatprep.subr.mxu0 0.0
  %214 = vmatpush2.msra.mxu0 %v60
  %215 = vmatprep.subr.mxu0 0.0
  %216 = vmatpush2.msra.mxu0 %v59
  %217 = vmatprep.subr.mxu0 0.0
  %218 = vmatpush2.msra.mxu0 %v58
  %219 = vmatprep.subr.mxu0 0.0
  %220 = vmatpush2.msra.mxu0 %v57
  %221 = vmatprep.subr.mxu0 0.0
  %222 = vmatpush2.msra.mxu0 %v56
  %223 = vmatprep.subr.mxu0 0.0
  %224 = vmatpush2.msra.mxu0 %v55
  %225 = vmatprep.subr.mxu0 0.0
  %226 = vmatpush2.msra.mxu0 %v54
  %227 = vmatprep.subr.mxu0 0.0
  %228 = vmatpush2.msra.mxu0 %v53
  %229 = vmatprep.mubr.f32.mxu0 %v158
  %230 = vmatmul.mubr.f32.gmra.mxu0 %v157
  %v231 = vpop.f32.mrf.mxu0
  %v232 = vadd.f32 %v163, %v231
  %v233 = vpop.f32.mrf.mxu0
  %234 = vdwg.mxu0
  %235 = vrot.lane.b32.xlu0 %v20, 64
  %v236 = vpop.permute.xlu0 %235
  %v237 = vsel %vm82, %v236, 0
  %239 = vmatprep.subr.mxu0 0.0
  %240 = vmatpush1.msra.mxu0 0.0
  %241 = vmatprep.subr.mxu0 0.0
  %242 = vmatpush1.msra.mxu0 0.0
  %243 = vmatprep.subr.mxu0 0.0
  %244 = vmatpush1.msra.mxu0 0.0
  %245 = vmatprep.subr.mxu0 0.0
  %246 = vmatpush1.msra.mxu0 0.0
  %247 = vmatprep.subr.mxu0 0.0
  %248 = vmatpush1.msra.mxu0 0.0
  %249 = vmatprep.subr.mxu0 0.0
  %250 = vmatpush1.msra.mxu0 0.0
  %251 = vmatprep.subr.mxu0 0.0
  %252 = vmatpush1.msra.mxu0 0.0
  %253 = vmatprep.subr.mxu0 0.0
  %254 = vmatpush1.msra.mxu0 0.0
  %255 = vmatprep.subr.mxu0 %v36
  %256 = vmatpush1.msra.mxu0 %v35
  %257 = vmatprep.subr.mxu0 %v34
  %258 = vmatpush1.msra.mxu0 %v33
  %259 = vmatprep.subr.mxu0 %v32
  %260 = vmatpush1.msra.mxu0 %v31
  %261 = vmatprep.subr.mxu0 %v30
  %262 = vmatpush1.msra.mxu0 %v29
  %263 = vmatprep.subr.mxu0 %v28
  %264 = vmatpush1.msra.mxu0 %v27
  %265 = vmatprep.subr.mxu0 %v26
  %266 = vmatpush1.msra.mxu0 %v25
  %267 = vmatprep.subr.mxu0 %v24
  %268 = vmatpush1.msra.mxu0 %v23
  %269 = vmatprep.subr.mxu0 %v22
  %270 = vmatpush1.msra.mxu0 %v21
  %271 = vmatprep.subr.mxu0 0.0
  %272 = vmatpush2.msra.mxu0 0.0
  %273 = vmatprep.subr.mxu0 0.0
  %274 = vmatpush2.msra.mxu0 0.0
  %275 = vmatprep.subr.mxu0 0.0
  %276 = vmatpush2.msra.mxu0 0.0
  %277 = vmatprep.subr.mxu0 0.0
  %278 = vmatpush2.msra.mxu0 0.0
  %279 = vmatprep.subr.mxu0 0.0
  %280 = vmatpush2.msra.mxu0 0.0
  %281 = vmatprep.subr.mxu0 0.0
  %282 = vmatpush2.msra.mxu0 0.0
  %283 = vmatprep.subr.mxu0 0.0
  %284 = vmatpush2.msra.mxu0 0.0
  %285 = vmatprep.subr.mxu0 0.0
  %286 = vmatpush2.msra.mxu0 0.0
  %287 = vmatprep.subr.mxu0 0.0
  %288 = vmatpush2.msra.mxu0 0.0
  %289 = vmatprep.subr.mxu0 0.0
  %290 = vmatpush2.msra.mxu0 0.0
  %291 = vmatprep.subr.mxu0 0.0
  %292 = vmatpush2.msra.mxu0 0.0
  %293 = vmatprep.subr.mxu0 0.0
  %294 = vmatpush2.msra.mxu0 0.0
  %295 = vmatprep.subr.mxu0 0.0
  %296 = vmatpush2.msra.mxu0 0.0
  %297 = vmatprep.subr.mxu0 0.0
  %298 = vmatpush2.msra.mxu0 0.0
  %299 = vmatprep.subr.mxu0 0.0
  %300 = vmatpush2.msra.mxu0 0.0
  %301 = vmatprep.subr.mxu0 0.0
  %302 = vmatpush2.msra.mxu0 0.0
  %303 = vmatprep.mubr.f32.mxu0 0.0
  %304 = vmatmul.mubr.f32.gmra.mxu0 %v237
  %v305 = vpop.f32.mrf.mxu0
  %v306 = vadd.f32 %v75, %v305
  %v307 = vpop.f32.mrf.mxu0
  %v308 = vadd.f32 %v79, %v307
  %309 = vdwg.mxu0
  %v310 = vmax.f32 %v306, 0.0
  %v311 = vmax.f32 %v308, 0.0
  %312 = vmatprep.subr.mxu0 0.0
  %313 = vmatpush1.msra.mxu0 %v52
  %314 = vmatprep.subr.mxu0 0.0
  %315 = vmatpush1.msra.mxu0 %v51
  %316 = vmatprep.subr.mxu0 0.0
  %317 = vmatpush1.msra.mxu0 %v50
  %318 = vmatprep.subr.mxu0 0.0
  %319 = vmatpush1.msra.mxu0 %v49
  %320 = vmatprep.subr.mxu0 0.0
  %321 = vmatpush1.msra.mxu0 %v48
  %322 = vmatprep.subr.mxu0 0.0
  %323 = vmatpush1.msra.mxu0 %v47
  %324 = vmatprep.subr.mxu0 0.0
  %325 = vmatpush1.msra.mxu0 %v46
  %326 = vmatprep.subr.mxu0 0.0
  %327 = vmatpush1.msra.mxu0 %v45
  %328 = vmatprep.subr.mxu0 0.0
  %329 = vmatpush1.msra.mxu0 %v44
  %330 = vmatprep.subr.mxu0 0.0
  %331 = vmatpush1.msra.mxu0 %v43
  %332 = vmatprep.subr.mxu0 0.0
  %333 = vmatpush1.msra.mxu0 %v42
  %334 = vmatprep.subr.mxu0 0.0
  %335 = vmatpush1.msra.mxu0 %v41
  %336 = vmatprep.subr.mxu0 0.0
  %337 = vmatpush1.msra.mxu0 %v40
  %338 = vmatprep.subr.mxu0 0.0
  %339 = vmatpush1.msra.mxu0 %v39
  %340 = vmatprep.subr.mxu0 0.0
  %341 = vmatpush1.msra.mxu0 %v38
  %342 = vmatprep.subr.mxu0 0.0
  %343 = vmatpush1.msra.mxu0 %v37
  %344 = vmatprep.subr.mxu0 0.0
  %345 = vmatpush2.msra.mxu0 %v68
  %346 = vmatprep.subr.mxu0 0.0
  %347 = vmatpush2.msra.mxu0 %v67
  %348 = vmatprep.subr.mxu0 0.0
  %349 = vmatpush2.msra.mxu0 %v66
  %350 = vmatprep.subr.mxu0 0.0
  %351 = vmatpush2.msra.mxu0 %v65
  %352 = vmatprep.subr.mxu0 0.0
  %353 = vmatpush2.msra.mxu0 %v64
  %354 = vmatprep.subr.mxu0 0.0
  %355 = vmatpush2.msra.mxu0 %v63
  %356 = vmatprep.subr.mxu0 0.0
  %357 = vmatpush2.msra.mxu0 %v62
  %358 = vmatprep.subr.mxu0 0.0
  %359 = vmatpush2.msra.mxu0 %v61
  %360 = vmatprep.subr.mxu0 0.0
  %361 = vmatpush2.msra.mxu0 %v60
  %362 = vmatprep.subr.mxu0 0.0
  %363 = vmatpush2.msra.mxu0 %v59
  %364 = vmatprep.subr.mxu0 0.0
  %365 = vmatpush2.msra.mxu0 %v58
  %366 = vmatprep.subr.mxu0 0.0
  %367 = vmatpush2.msra.mxu0 %v57
  %368 = vmatprep.subr.mxu0 0.0
  %369 = vmatpush2.msra.mxu0 %v56
  %370 = vmatprep.subr.mxu0 0.0
  %371 = vmatpush2.msra.mxu0 %v55
  %372 = vmatprep.subr.mxu0 0.0
  %373 = vmatpush2.msra.mxu0 %v54
  %374 = vmatprep.subr.mxu0 0.0
  %375 = vmatpush2.msra.mxu0 %v53
  %376 = vmatprep.mubr.f32.mxu0 %v311
  %377 = vmatmul.mubr.f32.gmra.mxu0 %v310
  %v378 = vpop.f32.mrf.mxu0
  %v379 = vadd.f32 %v163, %v378
  %v380 = vpop.f32.mrf.mxu0
  %381 = vdwg.mxu0
  %383 = vrot.lane.b32.xlu0 %v379, 64
  %v384 = vpop.permute.xlu0 %383
  %v386 = vsel %vm82, %v232, %v384
  %387 = vst [vmem:[%s5] sm:$0xff] %v386
  // Predicated region
  $region22: #{feed_forward.1} parent=0 // pred_check
    _
  $region23: #{feed_forward.1} parent=0 // pred_check_branch
    %389 = sbr.rel (0) target = $region25
  $region24: #{feed_forward.1} parent=0 // pred_region
    _
  $region25: #{feed_forward.1} parent=0 // pred_fallthru
    _
  // Predicated region
  $region26: #{feed_forward.1} parent=0 // pred_check
    _
  $region27: #{feed_forward.1} parent=0 // pred_check_branch
    %391 = sbr.rel (0) target = $region29
  $region28: #{feed_forward.1} parent=0 // pred_region
    _
  $region29: #{feed_forward.1} parent=0 // pred_fallthru
    _

</llo_original>
